<compile_context>
chip_gen: v7x
topology: tpu7x:2x2x1
jax: 0.10.0
libtpu: 0.0.40
codegen_flags: <defaults>
</compile_context>

<pallas_src>
import functools

import jax
import jax.numpy as jnp
from jax.experimental import pallas as pl
from jax.experimental.pallas import tpu as pltpu


_LANE = 128
_NEG_INF = -1e30  # finite "minus infinity" for padded head logits


def _round_up(x, m):
    return (x + m - 1) // m * m


def _nbytes(shape, dtype):
    n = 1
    for s in shape:
        n *= s
    return n * jnp.dtype(dtype).itemsize


def _physical_vmem_bytes():
    """Per-core VMEM capacity; conservative fallback if the query fails."""
    try:
        return int(pltpu.get_tpu_info().vmem_capacity_bytes)
    except Exception:
        return 64 << 20  # v7x per-TensorCore VMEM (smallest current gen)


def _log_softmax(h):
    m = jnp.max(h, axis=-1, keepdims=True)
    z = h - m
    return z - jnp.log(jnp.sum(jnp.exp(z), axis=-1, keepdims=True))


def _flexnet_kernel(*refs, num_layers, activation_fct, model, matmul_dtype):
    """refs = (x_ref, w1_ref, b1_ref, ..., wN_ref, bN_ref, o_ref)."""
    x_ref = refs[0]
    o_ref = refs[-1]
    param_refs = refs[1:-1]

    # x already arrives in matmul_dtype (cast once in the wrapper).
    h = x_ref[...]

    # TODO(synk): nn.Dropout between hidden blocks is the inference-mode
    # identity here; training-time stochastic dropout is not implemented.

    for layer in range(num_layers):
        w_ref = param_refs[2 * layer]
        b_ref = param_refs[2 * layer + 1]
        # Matmul operands in matmul_dtype (bf16 halves weight/x DMA bytes and
        # hits the fast MXU path); accumulate + bias/activation in f32.
        h = (
            jnp.dot(
                h.astype(matmul_dtype),          # no-op when already matmul_dtype
                w_ref[...],
                preferred_element_type=jnp.float32,
            )
            + b_ref[...]
        )
        act = model if layer == num_layers - 1 else activation_fct
        if act == "relu":
            h = jnp.maximum(h, 0.0)
        elif act == "sigmoid":
            h = jax.nn.sigmoid(h)                # EUP path, not a VALU divide
        elif act == "multi_class":
            # For the head, padded lanes carry zero weights and -1e30 bias, so
            # they contribute exp(.)=0 and real lanes' log-softmax is exact.
            h = _log_softmax(h)
        # 'regression' -> Identity: nothing to do.

    # Narrow store: only the first out_store (= round_up(out_dim, 8)) lanes of
    # the 128-lane head compute are written back (writeback was the dominant
    # HBM stream at 128 f32 lanes).  Real columns are sliced off outside.
    o_ref[...] = h[:, : o_ref.shape[-1]].astype(o_ref.dtype)


def flexnet_forward(x, weights, biases, *, activation_fct, model,
                    matmul_dtype=jnp.float32):
    """x: [B, input_dim]; weights[i]: [in_i, out_i]; biases[i]: [1, out_i]."""
    num_layers = len(weights)
    out_dim = weights[-1].shape[1]
    B, in_dim = x.shape

    # ---- head padding ------------------------------------------------------
    # Compute width: pad the head to 128 lanes so the in-kernel log_softmax
    # reduces over one full vreg row (padded lanes: zero weight, -1e30 bias).
    out_cpad = _round_up(out_dim, _LANE)
    # Store width: only 8 lanes are written to HBM (16x less writeback than
    # the 128-lane f32 output).
    out_store = _round_up(out_dim, 8)
    w_last, b_last = weights[-1], biases[-1]
    pad_cols = out_cpad - out_dim
    if pad_cols:
        w_last = jnp.pad(w_last, ((0, 0), (0, pad_cols)))
        pad_bias = _NEG_INF if model == "multi_class" else 0.0
        b_last = jnp.pad(b_last, ((0, 0), (0, pad_cols)),
                         constant_values=pad_bias)
    kw = [w.astype(matmul_dtype) for w in weights[:-1]]
    kw.append(w_last.astype(matmul_dtype))
    kb = list(biases[:-1]) + [b_last]          # biases stay f32

    # ---- batch tiling: big tiles, grid >= 2 when the batch allows -----------
    # Mem/overhead-bound kernel: large tiles amortize the ~0.35us/step fixed
    # cost (measured tile sweeps: 256-row tiles ~60-65% of HBM roofline vs
    # ~85% at 512-1024).  tb=1024 costs only a few MB of VMEM double-buffered.
    desired_tb = 1024
    tb = min(desired_tb, _round_up(max(B, 1), 8))
    if tb >= 16 and _round_up(B, tb) // tb < 2:
        # A single-step grid would leave one v7x TensorCore idle: the parallel
        # batch axis is the only thing sharded across the two TCs.
        tb = _round_up((B + 1) // 2, 8)
    b_pad = _round_up(B, tb)
    grid = (b_pad // tb,)

    # Cast x to the matmul dtype in the wrapper (halves the x HBM read on the
    # bf16 path and removes the per-tile cast in the kernel).
    xp = jnp.pad(x, ((0, b_pad - B), (0, 0))).astype(matmul_dtype)

    operands = [xp]
    for w, b in zip(kw, kb):
        operands += [w, b]

    in_specs = [pl.BlockSpec((tb, in_dim), lambda i: (i, 0))]
    for w, b in zip(kw, kb):
        in_specs.append(pl.BlockSpec(w.shape, lambda i: (0, 0)))
        in_specs.append(pl.BlockSpec(b.shape, lambda i: (0, 0)))
    out_specs = pl.BlockSpec((tb, out_store), lambda i: (i, 0))

    # ---- generation-aware VMEM budget ---------------------------------------
    io_bytes = 2 * (_nbytes((tb, in_dim), xp.dtype)
                    + _nbytes((tb, out_store), jnp.float32))
    param_bytes = 2 * sum(_nbytes(w.shape, w.dtype) + _nbytes(b.shape, b.dtype)
                          for w, b in zip(kw, kb))
    max_width = max([in_dim] + [w.shape[1] for w in kw])
    act_bytes = 3 * tb * max_width * 4        # live f32 activations (estimate)
    need = io_bytes + param_bytes + act_bytes + (4 << 20)
    cap = (_physical_vmem_bytes() * 55) // 100
    vmem_limit = int(min(max(need, 8 << 20), max(cap, 8 << 20)))

    # ---- cost hint so XLA schedules sensibly around the custom call ---------
    flops = 2 * b_pad * sum(w.shape[0] * w.shape[1] for w in kw)
    transcendentals = 0
    if model == "multi_class":
        transcendentals += b_pad * (out_cpad + 1)
    if activation_fct in ("sigmoid", "multi_class"):
        transcendentals += b_pad * sum(w.shape[1] for w in kw[:-1])
    bytes_accessed = int(sum(int(op.size) * op.dtype.itemsize for op in operands)
                         + b_pad * out_store * 4)
    cost = pl.CostEstimate(flops=int(flops),
                           transcendentals=int(transcendentals),
                           bytes_accessed=bytes_accessed)

    kernel = functools.partial(
        _flexnet_kernel,
        num_layers=num_layers,
        activation_fct=activation_fct,
        model=model,
        matmul_dtype=matmul_dtype,
    )

    out = pl.pallas_call(
        kernel,
        out_shape=jax.ShapeDtypeStruct((b_pad, out_store), jnp.float32),
        grid=grid,
        in_specs=in_specs,
        out_specs=out_specs,
        compiler_params=pltpu.CompilerParams(
            dimension_semantics=("parallel",),
            vmem_limit_bytes=vmem_limit,
        ),
        cost_estimate=cost,
    )(*operands)

    return out[:B, :out_dim]


def _ref_forward(x, weights, biases, *, activation_fct, model,
                 matmul_dtype=jnp.float32):
    """Pure-JAX reference (same matmul operand dtype as the kernel)."""
    h = x.astype(jnp.float32)
    n = len(weights)
    for i, (w, b) in enumerate(zip(weights, biases)):
        h = jnp.dot(h.astype(matmul_dtype), w.astype(matmul_dtype),
                    preferred_element_type=jnp.float32) + b
        if i < n - 1:
            if activation_fct == "relu":
                h = jnp.maximum(h, 0.0)
            elif activation_fct == "sigmoid":
                h = jax.nn.sigmoid(h)
            elif activation_fct == "multi_class":
                h = jax.nn.log_softmax(h, axis=-1)
        else:
            if model == "multi_class":
                h = jax.nn.log_softmax(h, axis=-1)
    return h


def init_flexnet_params(key, input_dim, hidden_dims, model):
    """Deterministic synthetic init matching the PyTorch layer shapes.

    PyTorch nn.Linear stores weight as [out, in]; we generate in that shape and
    transpose to [in, out] for the kernel's x @ W layout.
    """
    out_dim = {"regression": 1, "multi_class": 5}[model]
    dims = [input_dim] + list(hidden_dims) + [out_dim]
    weights, biases = [], []
    for i in range(len(dims) - 1):
        fan_in, fan_out = dims[i], dims[i + 1]
        key, kw, kb = jax.random.split(key, 3)
        bound = 1.0 / jnp.sqrt(fan_in)
        w_pt = jax.random.uniform(
            kw, (fan_out, fan_in), jnp.float32, minval=-bound, maxval=bound
        )
        b_pt = jax.random.uniform(
            kb, (fan_out,), jnp.float32, minval=-bound, maxval=bound
        )
        weights.append(w_pt.T)              # [in, out] for the kernel
        biases.append(b_pt.reshape(1, -1))  # [1, out] for lane broadcast
    return weights, biases


if __name__ == "__main__":
    # FlexNet(input_dim=16, hidden_dims=[32, 32], model='multi_class',
    #         dropout_rate=0.2, activation_fct='relu')
    input_dim = 16
    hidden_dims = [32, 32]
    model = "multi_class"
    activation_fct = "relu"
    batch = 8

    key = jax.random.PRNGKey(0)
    key, kx = jax.random.split(key)
    x = jax.random.normal(kx, (batch, input_dim), dtype=jnp.float32)
    weights, biases = init_flexnet_params(key, input_dim, hidden_dims, model)

    # f32 matmul path (tight correctness check).
    out = flexnet_forward(
        x, weights, biases, activation_fct=activation_fct, model=model,
        matmul_dtype=jnp.float32,
    )
    out = jax.block_until_ready(out)
    ref = _ref_forward(
        x, weights, biases, activation_fct=activation_fct, model=model,
        matmul_dtype=jnp.float32,
    )
    assert out.shape == (batch, 5), out.shape
    assert jnp.allclose(out, ref, atol=1e-5, rtol=1e-5), (
        float(jnp.max(jnp.abs(out - ref)))
    )

    # bf16-matmul / f32-accumulate path (fast MXU path on v6e/v7x).
    out_bf = flexnet_forward(
        x, weights, biases, activation_fct=activation_fct, model=model,
        matmul_dtype=jnp.bfloat16,
    )
    out_bf = jax.block_until_ready(out_bf)
    ref_bf = _ref_forward(
        x, weights, biases, activation_fct=activation_fct, model=model,
        matmul_dtype=jnp.bfloat16,
    )
    assert out_bf.shape == (batch, 5), out_bf.shape
    assert jnp.allclose(out_bf, ref_bf, atol=2e-3, rtol=2e-3), (
        float(jnp.max(jnp.abs(out_bf - ref_bf)))
    )

    print("KERNEL_OK")
</pallas_src>

<mosaic_0001>
module attributes {stable_mosaic.version = 11 : i64} {
  func.func @_flexnet_kernel(%arg0: i32, %arg1: memref<8x16xf32, #tpu.memory_space<vmem>>, %arg2: memref<16x32xf32, #tpu.memory_space<vmem>>, %arg3: memref<1x32xf32, #tpu.memory_space<vmem>>, %arg4: memref<32x32xf32, #tpu.memory_space<vmem>>, %arg5: memref<1x32xf32, #tpu.memory_space<vmem>>, %arg6: memref<32x128xf32, #tpu.memory_space<vmem>>, %arg7: memref<1x128xf32, #tpu.memory_space<vmem>>, %arg8: memref<8x8xf32, #tpu.memory_space<vmem>>) attributes {dimension_semantics = [#tpu.dimension_semantics<parallel>], iteration_bounds = array<i64: 1>, scalar_prefetch = 0 : i64, scratch_operands = 0 : i64, tpu.core_type = #tpu.core_type<tc>, window_params = [{transform_indices = @transform_0, window_bounds = array<i64: 8, 16>}, {pipeline_mode = #tpu.pipeline_mode<synchronous>, transform_indices = @transform_1, window_bounds = array<i64: 16, 32>}, {pipeline_mode = #tpu.pipeline_mode<synchronous>, transform_indices = @transform_2, window_bounds = array<i64: 1, 32>}, {pipeline_mode = #tpu.pipeline_mode<synchronous>, transform_indices = @transform_3, window_bounds = array<i64: 32, 32>}, {pipeline_mode = #tpu.pipeline_mode<synchronous>, transform_indices = @transform_4, window_bounds = array<i64: 1, 32>}, {pipeline_mode = #tpu.pipeline_mode<synchronous>, transform_indices = @transform_5, window_bounds = array<i64: 32, 128>}, {pipeline_mode = #tpu.pipeline_mode<synchronous>, transform_indices = @transform_6, window_bounds = array<i64: 1, 128>}, {transform_indices = @transform_7, window_bounds = array<i64: 8, 8>}]} {
    %c0 = arith.constant 0 : index
    %c0_0 = arith.constant 0 : index
    %0 = vector.load %arg1[%c0, %c0_0] : memref<8x16xf32, #tpu.memory_space<vmem>>, vector<8x16xf32>
    %c0_1 = arith.constant 0 : index
    %c0_2 = arith.constant 0 : index
    %1 = vector.load %arg2[%c0_1, %c0_2] : memref<16x32xf32, #tpu.memory_space<vmem>>, vector<16x32xf32>
    %cst = arith.constant dense<0.000000e+00> : vector<8x32xf32>
    %2 = tpu.matmul %0, %1, %cst {dimension_numbers = #tpu.dot_dimension_numbers<[1], [0], [0], [1], [0, 0, 1, 1], [], []>} : vector<8x16xf32>, vector<16x32xf32>, vector<8x32xf32> -> vector<8x32xf32>
    %c0_3 = arith.constant 0 : index
    %c0_4 = arith.constant 0 : index
    %3 = vector.load %arg3[%c0_3, %c0_4] : memref<1x32xf32, #tpu.memory_space<vmem>>, vector<1x32xf32>
    %4 = vector.broadcast %3 : vector<1x32xf32> to vector<8x32xf32>
    %5 = arith.addf %2, %4 : vector<8x32xf32>
    %cst_5 = arith.constant 0.000000e+00 : f32
    %6 = vector.broadcast %cst_5 : f32 to vector<8x32xf32>
    %7 = arith.maximumf %5, %6 : vector<8x32xf32>
    %c0_6 = arith.constant 0 : index
    %c0_7 = arith.constant 0 : index
    %8 = vector.load %arg4[%c0_6, %c0_7] : memref<32x32xf32, #tpu.memory_space<vmem>>, vector<32x32xf32>
    %cst_8 = arith.constant dense<0.000000e+00> : vector<8x32xf32>
    %9 = tpu.matmul %7, %8, %cst_8 {dimension_numbers = #tpu.dot_dimension_numbers<[1], [0], [0], [1], [0, 0, 1, 1], [], []>} : vector<8x32xf32>, vector<32x32xf32>, vector<8x32xf32> -> vector<8x32xf32>
    %c0_9 = arith.constant 0 : index
    %c0_10 = arith.constant 0 : index
    %10 = vector.load %arg5[%c0_9, %c0_10] : memref<1x32xf32, #tpu.memory_space<vmem>>, vector<1x32xf32>
    %11 = vector.broadcast %10 : vector<1x32xf32> to vector<8x32xf32>
    %12 = arith.addf %9, %11 : vector<8x32xf32>
    %cst_11 = arith.constant 0.000000e+00 : f32
    %13 = vector.broadcast %cst_11 : f32 to vector<8x32xf32>
    %14 = arith.maximumf %12, %13 : vector<8x32xf32>
    %c0_12 = arith.constant 0 : index
    %c0_13 = arith.constant 0 : index
    %15 = vector.load %arg6[%c0_12, %c0_13] : memref<32x128xf32, #tpu.memory_space<vmem>>, vector<32x128xf32>
    %cst_14 = arith.constant dense<0.000000e+00> : vector<8x128xf32>
    %16 = tpu.matmul %14, %15, %cst_14 {dimension_numbers = #tpu.dot_dimension_numbers<[1], [0], [0], [1], [0, 0, 1, 1], [], []>} : vector<8x32xf32>, vector<32x128xf32>, vector<8x128xf32> -> vector<8x128xf32>
    %c0_15 = arith.constant 0 : index
    %c0_16 = arith.constant 0 : index
    %17 = vector.load %arg7[%c0_15, %c0_16] : memref<1x128xf32, #tpu.memory_space<vmem>>, vector<1x128xf32>
    %18 = vector.broadcast %17 : vector<1x128xf32> to vector<8x128xf32>
    %19 = arith.addf %16, %18 : vector<8x128xf32>
    %cst_17 = arith.constant dense<0xFF800000> : vector<8xf32>
    %20 = vector.multi_reduction <maximumf>, %19, %cst_17 [1] : vector<8x128xf32> to vector<8xf32>
    %21 = vector.shape_cast %20 : vector<8xf32> to vector<8x1xf32>
    %22 = vector.broadcast %21 : vector<8x1xf32> to vector<8x128xf32>
    %23 = arith.subf %19, %22 : vector<8x128xf32>
    %24 = math.exp %23 : vector<8x128xf32>
    %cst_18 = arith.constant dense<0.000000e+00> : vector<8xf32>
    %25 = vector.multi_reduction <add>, %24, %cst_18 [1] : vector<8x128xf32> to vector<8xf32>
    %26 = vector.shape_cast %25 : vector<8xf32> to vector<8x1xf32>
    %27 = math.log %26 : vector<8x1xf32>
    %28 = vector.broadcast %27 : vector<8x1xf32> to vector<8x128xf32>
    %29 = arith.subf %23, %28 : vector<8x128xf32>
    %30 = vector.extract_strided_slice %29 {offsets = [0, 0], sizes = [8, 8], strides = [1, 1]} : vector<8x128xf32> to vector<8x8xf32>
    %c0_19 = arith.constant 0 : index
    %c0_20 = arith.constant 0 : index
    %31 = vector.load %arg8[%c0_19, %c0_20] : memref<8x8xf32, #tpu.memory_space<vmem>>, vector<8x8xf32>
    tpu.vector_store %arg8[%c0_19, %c0_20], %30 {strides = array<i32>} : memref<8x8xf32, #tpu.memory_space<vmem>>, vector<8x8xf32>,
    return
  }
  func.func @transform_0(%arg0: i32) -> (i32, i32) {
    %c0_i32 = arith.constant 0 : i32
    %c0_i32_0 = arith.constant 0 : i32
    return %arg0, %c0_i32 : i32, i32
  }
  func.func @transform_1(%arg0: i32) -> (i32, i32) {
    %c0_i32 = arith.constant 0 : i32
    %c0_i32_0 = arith.constant 0 : i32
    %c0_i32_1 = arith.constant 0 : i32
    return %c0_i32, %c0_i32_0 : i32, i32
  }
  func.func @transform_2(%arg0: i32) -> (i32, i32) {
    %c0_i32 = arith.constant 0 : i32
    %c0_i32_0 = arith.constant 0 : i32
    %c0_i32_1 = arith.constant 0 : i32
    return %c0_i32, %c0_i32_0 : i32, i32
  }
  func.func @transform_3(%arg0: i32) -> (i32, i32) {
    %c0_i32 = arith.constant 0 : i32
    %c0_i32_0 = arith.constant 0 : i32
    %c0_i32_1 = arith.constant 0 : i32
    return %c0_i32, %c0_i32_0 : i32, i32
  }
  func.func @transform_4(%arg0: i32) -> (i32, i32) {
    %c0_i32 = arith.constant 0 : i32
    %c0_i32_0 = arith.constant 0 : i32
    %c0_i32_1 = arith.constant 0 : i32
    return %c0_i32, %c0_i32_0 : i32, i32
  }
  func.func @transform_5(%arg0: i32) -> (i32, i32) {
    %c0_i32 = arith.constant 0 : i32
    %c0_i32_0 = arith.constant 0 : i32
    %c0_i32_1 = arith.constant 0 : i32
    return %c0_i32, %c0_i32_0 : i32, i32
  }
  func.func @transform_6(%arg0: i32) -> (i32, i32) {
    %c0_i32 = arith.constant 0 : i32
    %c0_i32_0 = arith.constant 0 : i32
    %c0_i32_1 = arith.constant 0 : i32
    return %c0_i32, %c0_i32_0 : i32, i32
  }
  func.func @transform_7(%arg0: i32) -> (i32, i32) {
    %c0_i32 = arith.constant 0 : i32
    %c0_i32_0 = arith.constant 0 : i32
    return %arg0, %c0_i32 : i32, i32
  }
}

</mosaic_0001>

<llo_original>
// kernel: tpu_custom_call.1
$region0: #{tpu_custom_call.1}
  #allocation0 [shape = 'u32[]', space=smem, size = 0x4, offset = 0x4, fixed_abs, tag = 'smem constant byte address 0x4 - core index']
  #allocation1 [shape = 'u32[144,128]{1,0:T(1,128)}', space=vmem, size = 0x12000, scoped, tag = 'internal scratch']
  %s0 = inlined_call_operand.hbm [shape: f32[8,16], index: 0, kind: input, shape index: {}]
  %s1 = inlined_call_operand.hbm [shape: f32[16,32], index: 1, kind: input, shape index: {}]
  %s2 = inlined_call_operand.vmem [shape: f32[1,32], index: 2, kind: input, shape index: {}]
  %s3 = inlined_call_operand.hbm [shape: f32[32,32], index: 3, kind: input, shape index: {}]
  %s4 = inlined_call_operand.vmem [shape: f32[1,32], index: 4, kind: input, shape index: {}]
  %s5 = inlined_call_operand.hbm [shape: f32[32,128], index: 5, kind: input, shape index: {}]
  %s6 = inlined_call_operand.vmem [shape: f32[1,128], index: 6, kind: input, shape index: {}]
  %s7 = inlined_call_operand.hbm [shape: f32[8,8], index: 7, kind: output, shape index: {}]
  %s8 = sld [smem:[#allocation0]]
  $region54: #{tpu_custom_call.1} parent=0
    _
  %s10 = ssub.s32 1, %s8
  %s11 = scalar_select 0, %s10, %s8
  $region1: #{tpu_custom_call.1} parent=0
    #allocation2 [shape = 'u8[4096]{0}', space=vmem, size = 0x1000, scoped, tag = 'input window, operand 0, single buffered']
    #allocation3 [shape = 's32[1]{0}', space=sflag, size = 0x4, scoped, tag = 'scoped memory for tpu_custom_call.1']
    #allocation4 [shape = 's32[1]{0}', space=sflag, size = 0x4, scoped, tag = 'scoped memory for tpu_custom_call.1']
    #allocation5 [shape = 'u8[8192]{0}', space=vmem, size = 0x2000, scoped, tag = 'input window, operand 1, single buffered']
    #allocation6 [shape = 's32[1]{0}', space=sflag, size = 0x4, scoped, tag = 'scoped memory for tpu_custom_call.1']
    #allocation7 [shape = 'u8[16384]{0}', space=vmem, size = 0x4000, scoped, tag = 'input window, operand 3, single buffered']
    #allocation8 [shape = 'u8[16384]{0}', space=vmem, size = 0x4000, scoped, tag = 'input window, operand 5, single buffered']
    #allocation9 [shape = 's32[1]{0}', space=sflag, size = 0x4, scoped, tag = 'scoped memory for tpu_custom_call.1']
    #allocation10 [shape = 'u8[4096]{0}', space=vmem, size = 0x1000, scoped, tag = 'output window, operand 0, single buffered']
    %12 = vsyncpa [#allocation3], 0
    %13 = vsyncpa [#allocation6], 0
    %14 = vsyncpa [#allocation9], 0
    %15 = vsyncpa [#allocation4], 0
    // Predicated region
    $region2: #{tpu_custom_call.1} parent=1 // pred_check
      _
    $region3: #{tpu_custom_call.1} parent=1 // pred_check_branch
      %17 = sbr.rel (0) target = $region5
    $region4: #{tpu_custom_call.1} parent=1 // pred_region
      %s19 = ssub.s32 128, 128
      %20 = vsyncadd [#allocation3], %s19
      %s22 = sshll.u32 [#allocation2], 4
      %s23 = int_to_ptr.vmem [resolvable:$true] %s22
      %25 = dma.hbm_to_vmem [thread:$0]  %s0, 128, %s23, [#allocation3]
    $region5: #{tpu_custom_call.1} parent=1 // pred_fallthru
      _
    // Predicated region
    $region6: #{tpu_custom_call.1} parent=1 // pred_check
      _
    $region7: #{tpu_custom_call.1} parent=1 // pred_check_branch
      %27 = sbr.rel (0) target = $region9
    $region8: #{tpu_custom_call.1} parent=1 // pred_region
      %s29 = ssub.s32 256, 256
      %30 = vsyncadd [#allocation6], %s29
      %s31 = sshll.u32 [#allocation5], 4
      %s32 = int_to_ptr.vmem [resolvable:$true] %s31
      %37 = dma.hbm_to_vmem [thread:$0]  %s1, 256, %s32, [#allocation6], 128, 128, 8
    $region9: #{tpu_custom_call.1} parent=1 // pred_fallthru
      _
    // Predicated region
    $region10: #{tpu_custom_call.1} parent=1 // pred_check
      _
    $region11: #{tpu_custom_call.1} parent=1 // pred_check_branch
      %39 = sbr.rel (0) target = $region13
    $region12: #{tpu_custom_call.1} parent=1 // pred_region
      _
    $region13: #{tpu_custom_call.1} parent=1 // pred_fallthru
      _
    // Predicated region
    $region14: #{tpu_custom_call.1} parent=1 // pred_check
      _
    $region15: #{tpu_custom_call.1} parent=1 // pred_check_branch
      %41 = sbr.rel (0) target = $region17
    $region16: #{tpu_custom_call.1} parent=1 // pred_region
      %s43 = ssub.s32 512, 512
      %44 = vsyncadd [#allocation6], %s43
      %s45 = sshll.u32 [#allocation7], 4
      %s46 = int_to_ptr.vmem [resolvable:$true] %s45
      %51 = dma.hbm_to_vmem [thread:$0]  %s3, 512, %s46, [#allocation6], 128, 128, 8
    $region17: #{tpu_custom_call.1} parent=1 // pred_fallthru
      _
    // Predicated region
    $region18: #{tpu_custom_call.1} parent=1 // pred_check
      _
    $region19: #{tpu_custom_call.1} parent=1 // pred_check_branch
      %53 = sbr.rel (0) target = $region21
    $region20: #{tpu_custom_call.1} parent=1 // pred_region
      _
    $region21: #{tpu_custom_call.1} parent=1 // pred_fallthru
      _
    // Predicated region
    $region22: #{tpu_custom_call.1} parent=1 // pred_check
      _
    $region23: #{tpu_custom_call.1} parent=1 // pred_check_branch
      %55 = sbr.rel (0) target = $region25
    $region24: #{tpu_custom_call.1} parent=1 // pred_region
      %s57 = ssub.s32 512, 512
      %58 = vsyncadd [#allocation9], %s57
      %s59 = sshll.u32 [#allocation8], 4
      %s60 = int_to_ptr.vmem [resolvable:$true] %s59
      %65 = dma.hbm_to_vmem [thread:$0]  %s5, 512, %s60, [#allocation9], 128, 128, 8
    $region25: #{tpu_custom_call.1} parent=1 // pred_fallthru
      _
    // Predicated region
    $region26: #{tpu_custom_call.1} parent=1 // pred_check
      _
    $region27: #{tpu_custom_call.1} parent=1 // pred_check_branch
      %67 = sbr.rel (0) target = $region29
    $region28: #{tpu_custom_call.1} parent=1 // pred_region
      _
    $region29: #{tpu_custom_call.1} parent=1 // pred_fallthru
      _
    // Predicated region
    $region30: #{tpu_custom_call.1} parent=1 // pred_check
      _
    $region31: #{tpu_custom_call.1} parent=1 // pred_check_branch
      %69 = sbr.rel (0) target = $region33
    $region32: #{tpu_custom_call.1} parent=1 // pred_region
      %70 = dma.done [#allocation3], 128
    $region33: #{tpu_custom_call.1} parent=1 // pred_fallthru
      _
    // Predicated region
    $region34: #{tpu_custom_call.1} parent=1 // pred_check
      _
    $region35: #{tpu_custom_call.1} parent=1 // pred_check_branch
      %72 = sbr.rel (0) target = $region37
    $region36: #{tpu_custom_call.1} parent=1 // pred_region
      %73 = dma.done [#allocation6], 256
    $region37: #{tpu_custom_call.1} parent=1 // pred_fallthru
      _
    // Predicated region
    $region38: #{tpu_custom_call.1} parent=1 // pred_check
      _
    $region39: #{tpu_custom_call.1} parent=1 // pred_check_branch
      %75 = sbr.rel (0) target = $region41
    $region40: #{tpu_custom_call.1} parent=1 // pred_region
      %76 = dma.done [#allocation6], 512
    $region41: #{tpu_custom_call.1} parent=1 // pred_fallthru
      _
    // Predicated region
    $region42: #{tpu_custom_call.1} parent=1 // pred_check
      _
    $region43: #{tpu_custom_call.1} parent=1 // pred_check_branch
      %78 = sbr.rel (0) target = $region45
    $region44: #{tpu_custom_call.1} parent=1 // pred_region
      %79 = dma.done [#allocation9], 512
    $region45: #{tpu_custom_call.1} parent=1 // pred_fallthru
      _
    %v80 = vld [vmem:[#allocation2] sm:$0xff]
    %v81 = vld [vmem:[#allocation5] sm:$0xff]
    %v82 = vld [vmem:[#allocation5 + $0x8] sm:$0xff]
    %v83 = vld [vmem:[%s2] sm:$0x1]
    %v85 = vlaneseq
    %v86 = vshrl.u32 %v85, 7
    %v87 = vsub.s32 0, %v86
    %v88 = vrot.slane %v83, %v87
    %vm90 = vcmask 130048
    %v92 = vsel %vm90, %v80, 0
    %94 = vmatprep.subr.mxu0 0.0
    %95 = vmatpush1.msra.mxu0 %v81
    %96 = vmatprep.subr.mxu0 0.0
    %97 = vmatpush1.msra.mxu0 %v82
    %98 = vmatprep.subr.mxu0 0.0
    %99 = vmatpush1.msra.mxu0 0.0
    %100 = vmatprep.subr.mxu0 0.0
    %101 = vmatpush1.msra.mxu0 0.0
    %102 = vmatprep.subr.mxu0 0.0
    %103 = vmatpush1.msra.mxu0 0.0
    %104 = vmatprep.subr.mxu0 0.0
    %105 = vmatpush1.msra.mxu0 0.0
    %106 = vmatprep.subr.mxu0 0.0
    %107 = vmatpush1.msra.mxu0 0.0
    %108 = vmatprep.subr.mxu0 0.0
    %109 = vmatpush1.msra.mxu0 0.0
    %110 = vmatprep.subr.mxu0 0.0
    %111 = vmatpush1.msra.mxu0 0.0
    %112 = vmatprep.subr.mxu0 0.0
    %113 = vmatpush1.msra.mxu0 0.0
    %114 = vmatprep.subr.mxu0 0.0
    %115 = vmatpush1.msra.mxu0 0.0
    %116 = vmatprep.subr.mxu0 0.0
    %117 = vmatpush1.msra.mxu0 0.0
    %118 = vmatprep.subr.mxu0 0.0
    %119 = vmatpush1.msra.mxu0 0.0
    %120 = vmatprep.subr.mxu0 0.0
    %121 = vmatpush1.msra.mxu0 0.0
    %122 = vmatprep.subr.mxu0 0.0
    %123 = vmatpush1.msra.mxu0 0.0
    %124 = vmatprep.subr.mxu0 0.0
    %125 = vmatpush1.msra.mxu0 0.0
    %126 = vmatprep.subr.mxu0 0.0
    %127 = vmatpush1.msra.mxu0 0.0
    %128 = vmatprep.subr.mxu0 0.0
    %129 = vmatpush1.msra.mxu0 0.0
    %130 = vmatprep.subr.mxu0 0.0
    %131 = vmatpush1.msra.mxu0 0.0
    %132 = vmatprep.subr.mxu0 0.0
    %133 = vmatpush1.msra.mxu0 0.0
    %134 = vmatprep.subr.mxu0 0.0
    %135 = vmatpush1.msra.mxu0 0.0
    %136 = vmatprep.subr.mxu0 0.0
    %137 = vmatpush1.msra.mxu0 0.0
    %138 = vmatprep.subr.mxu0 0.0
    %139 = vmatpush1.msra.mxu0 0.0
    %140 = vmatprep.subr.mxu0 0.0
    %141 = vmatpush1.msra.mxu0 0.0
    %142 = vmatprep.subr.mxu0 0.0
    %143 = vmatpush1.msra.mxu0 0.0
    %144 = vmatprep.subr.mxu0 0.0
    %145 = vmatpush1.msra.mxu0 0.0
    %146 = vmatprep.subr.mxu0 0.0
    %147 = vmatpush1.msra.mxu0 0.0
    %148 = vmatprep.subr.mxu0 0.0
    %149 = vmatpush1.msra.mxu0 0.0
    %150 = vmatprep.subr.mxu0 0.0
    %151 = vmatpush1.msra.mxu0 0.0
    %152 = vmatprep.subr.mxu0 0.0
    %153 = vmatpush1.msra.mxu0 0.0
    %154 = vmatprep.subr.mxu0 0.0
    %155 = vmatpush1.msra.mxu0 0.0
    %156 = vmatprep.subr.mxu0 0.0
    %157 = vmatpush1.msra.mxu0 0.0
    %158 = vmatprep.mubr.f32.mxu0 0.0
    %159 = vmatmul.mubr.f32.gmra.mrb[0].mxu0 %v92
    %v160 = vpop.f32.mrb[0].mxu0
    %v161 = vadd.f32 %v88, %v160
    %v162 = vpop.f32.mrb[0].mxu0
    %163 = vdwg.mxu0
    %v164 = vmax.f32 %v161, 0.0
    %v165 = vld [vmem:[#allocation7] sm:$0xff]
    %v166 = vld [vmem:[#allocation7 + $0x8] sm:$0xff]
    %v167 = vld [vmem:[#allocation7 + $0x10] sm:$0xff]
    %v168 = vld [vmem:[#allocation7 + $0x18] sm:$0xff]
    %v169 = vld [vmem:[%s4] sm:$0x1]
    %v171 = vlaneseq
    %v172 = vshrl.u32 %v171, 7
    %v173 = vsub.s32 0, %v172
    %v174 = vrot.slane %v169, %v173
    %vm176 = vcmask 261120
    %v178 = vsel %vm176, %v164, 0
    %180 = vmatprep.subr.mxu0 0.0
    %181 = vmatpush1.msra.mxu0 %v165
    %182 = vmatprep.subr.mxu0 0.0
    %183 = vmatpush1.msra.mxu0 %v166
    %184 = vmatprep.subr.mxu0 0.0
    %185 = vmatpush1.msra.mxu0 %v167
    %186 = vmatprep.subr.mxu0 0.0
    %187 = vmatpush1.msra.mxu0 %v168
    %188 = vmatprep.subr.mxu0 0.0
    %189 = vmatpush1.msra.mxu0 0.0
    %190 = vmatprep.subr.mxu0 0.0
    %191 = vmatpush1.msra.mxu0 0.0
    %192 = vmatprep.subr.mxu0 0.0
    %193 = vmatpush1.msra.mxu0 0.0
    %194 = vmatprep.subr.mxu0 0.0
    %195 = vmatpush1.msra.mxu0 0.0
    %196 = vmatprep.subr.mxu0 0.0
    %197 = vmatpush1.msra.mxu0 0.0
    %198 = vmatprep.subr.mxu0 0.0
    %199 = vmatpush1.msra.mxu0 0.0
    %200 = vmatprep.subr.mxu0 0.0
    %201 = vmatpush1.msra.mxu0 0.0
    %202 = vmatprep.subr.mxu0 0.0
    %203 = vmatpush1.msra.mxu0 0.0
    %204 = vmatprep.subr.mxu0 0.0
    %205 = vmatpush1.msra.mxu0 0.0
    %206 = vmatprep.subr.mxu0 0.0
    %207 = vmatpush1.msra.mxu0 0.0
    %208 = vmatprep.subr.mxu0 0.0
    %209 = vmatpush1.msra.mxu0 0.0
    %210 = vmatprep.subr.mxu0 0.0
    %211 = vmatpush1.msra.mxu0 0.0
    %212 = vmatprep.subr.mxu0 0.0
    %213 = vmatpush1.msra.mxu0 0.0
    %214 = vmatprep.subr.mxu0 0.0
    %215 = vmatpush1.msra.mxu0 0.0
    %216 = vmatprep.subr.mxu0 0.0
    %217 = vmatpush1.msra.mxu0 0.0
    %218 = vmatprep.subr.mxu0 0.0
    %219 = vmatpush1.msra.mxu0 0.0
    %220 = vmatprep.subr.mxu0 0.0
    %221 = vmatpush1.msra.mxu0 0.0
    %222 = vmatprep.subr.mxu0 0.0
    %223 = vmatpush1.msra.mxu0 0.0
    %224 = vmatprep.subr.mxu0 0.0
    %225 = vmatpush1.msra.mxu0 0.0
    %226 = vmatprep.subr.mxu0 0.0
    %227 = vmatpush1.msra.mxu0 0.0
    %228 = vmatprep.subr.mxu0 0.0
    %229 = vmatpush1.msra.mxu0 0.0
    %230 = vmatprep.subr.mxu0 0.0
    %231 = vmatpush1.msra.mxu0 0.0
    %232 = vmatprep.subr.mxu0 0.0
    %233 = vmatpush1.msra.mxu0 0.0
    %234 = vmatprep.subr.mxu0 0.0
    %235 = vmatpush1.msra.mxu0 0.0
    %236 = vmatprep.subr.mxu0 0.0
    %237 = vmatpush1.msra.mxu0 0.0
    %238 = vmatprep.subr.mxu0 0.0
    %239 = vmatpush1.msra.mxu0 0.0
    %240 = vmatprep.subr.mxu0 0.0
    %241 = vmatpush1.msra.mxu0 0.0
    %242 = vmatprep.subr.mxu0 0.0
    %243 = vmatpush1.msra.mxu0 0.0
    %244 = vmatprep.mubr.f32.mxu0 0.0
    %245 = vmatmul.mubr.f32.gmra.mrb[0].mxu0 %v178
    %v246 = vpop.f32.mrb[0].mxu0
    %v247 = vadd.f32 %v174, %v246
    %v248 = vpop.f32.mrb[0].mxu0
    %249 = vdwg.mxu0
    %v250 = vmax.f32 %v247, 0.0
    %v251 = vld [vmem:[#allocation8] sm:$0xff]
    %v252 = vld [vmem:[#allocation8 + $0x8] sm:$0xff]
    %v253 = vld [vmem:[#allocation8 + $0x10] sm:$0xff]
    %v254 = vld [vmem:[#allocation8 + $0x18] sm:$0xff]
    %v255 = vld [vmem:[%s6] sm:$0x1]
    %v257 = vlaneseq
    %v258 = vshrl.u32 %v257, 7
    %v259 = vsub.s32 0, %v258
    %v260 = vrot.slane %v255, %v259
    %v263 = vsel %vm176, %v250, 0
    %265 = vmatprep.subr.mxu0 0.0
    %266 = vmatpush1.msra.mxu0 %v251
    %267 = vmatprep.subr.mxu0 0.0
    %268 = vmatpush1.msra.mxu0 %v252
    %269 = vmatprep.subr.mxu0 0.0
    %270 = vmatpush1.msra.mxu0 %v253
    %271 = vmatprep.subr.mxu0 0.0
    %272 = vmatpush1.msra.mxu0 %v254
    %273 = vmatprep.subr.mxu0 0.0
    %274 = vmatpush1.msra.mxu0 0.0
    %275 = vmatprep.subr.mxu0 0.0
    %276 = vmatpush1.msra.mxu0 0.0
    %277 = vmatprep.subr.mxu0 0.0
    %278 = vmatpush1.msra.mxu0 0.0
    %279 = vmatprep.subr.mxu0 0.0
    %280 = vmatpush1.msra.mxu0 0.0
    %281 = vmatprep.subr.mxu0 0.0
    %282 = vmatpush1.msra.mxu0 0.0
    %283 = vmatprep.subr.mxu0 0.0
    %284 = vmatpush1.msra.mxu0 0.0
    %285 = vmatprep.subr.mxu0 0.0
    %286 = vmatpush1.msra.mxu0 0.0
    %287 = vmatprep.subr.mxu0 0.0
    %288 = vmatpush1.msra.mxu0 0.0
    %289 = vmatprep.subr.mxu0 0.0
    %290 = vmatpush1.msra.mxu0 0.0
    %291 = vmatprep.subr.mxu0 0.0
    %292 = vmatpush1.msra.mxu0 0.0
    %293 = vmatprep.subr.mxu0 0.0
    %294 = vmatpush1.msra.mxu0 0.0
    %295 = vmatprep.subr.mxu0 0.0
    %296 = vmatpush1.msra.mxu0 0.0
    %297 = vmatprep.subr.mxu0 0.0
    %298 = vmatpush1.msra.mxu0 0.0
    %299 = vmatprep.subr.mxu0 0.0
    %300 = vmatpush1.msra.mxu0 0.0
    %301 = vmatprep.subr.mxu0 0.0
    %302 = vmatpush1.msra.mxu0 0.0
    %303 = vmatprep.subr.mxu0 0.0
    %304 = vmatpush1.msra.mxu0 0.0
    %305 = vmatprep.subr.mxu0 0.0
    %306 = vmatpush1.msra.mxu0 0.0
    %307 = vmatprep.subr.mxu0 0.0
    %308 = vmatpush1.msra.mxu0 0.0
    %309 = vmatprep.subr.mxu0 0.0
    %310 = vmatpush1.msra.mxu0 0.0
    %311 = vmatprep.subr.mxu0 0.0
    %312 = vmatpush1.msra.mxu0 0.0
    %313 = vmatprep.subr.mxu0 0.0
    %314 = vmatpush1.msra.mxu0 0.0
    %315 = vmatprep.subr.mxu0 0.0
    %316 = vmatpush1.msra.mxu0 0.0
    %317 = vmatprep.subr.mxu0 0.0
    %318 = vmatpush1.msra.mxu0 0.0
    %319 = vmatprep.subr.mxu0 0.0
    %320 = vmatpush1.msra.mxu0 0.0
    %321 = vmatprep.subr.mxu0 0.0
    %322 = vmatpush1.msra.mxu0 0.0
    %323 = vmatprep.subr.mxu0 0.0
    %324 = vmatpush1.msra.mxu0 0.0
    %325 = vmatprep.subr.mxu0 0.0
    %326 = vmatpush1.msra.mxu0 0.0
    %327 = vmatprep.subr.mxu0 0.0
    %328 = vmatpush1.msra.mxu0 0.0
    %329 = vmatprep.mubr.f32.mxu0 0.0
    %330 = vmatmul.mubr.f32.gmra.mrb[0].mxu0 %v263
    %v331 = vpop.f32.mrb[0].mxu0
    %v332 = vadd.f32 %v260, %v331
    %v333 = vpop.f32.mrb[0].mxu0
    %334 = vdwg.mxu0
    %335 = vmax.xlane.f32.xlu0 %v332
    %v336 = vpop.xlane.xlu0 %335
    %v337 = vsub.f32 %v332, %v336
    %v338 = vmul.f32 %v337, 1.442695
    %v339 = vpow.pop %v338
    %340 = vadd.xlane.f32.xlu0 %v339
    %v341 = vpop.xlane.xlu0 %340
    %v342 = vlog2.pop %v341
    %v343 = vmul.f32 %v342, 0.6931472
    %v344 = vsub.f32 %v337, %v343
    %vm345 = vcmask 64512
    %346 = vst.msk [vmem:[#allocation10] sm:$0xff] %vm345, %v344
    // Predicated region
    $region46: #{tpu_custom_call.1} parent=1 // pred_check
      _
    $region47: #{tpu_custom_call.1} parent=1 // pred_check_branch
      %348 = sbr.rel (0) target = $region49
    $region48: #{tpu_custom_call.1} parent=1 // pred_region
      %s350 = ssub.s32 128, 128
      %351 = vsyncadd [#allocation4], %s350
      %s353 = sshll.u32 [#allocation10], 4
      %s354 = int_to_ptr.vmem [resolvable:$true] %s353
      %356 = dma.vmem_to_hbm [thread:$0]  %s354, 128, %s7, [#allocation4]
    $region49: #{tpu_custom_call.1} parent=1 // pred_fallthru
      _
    // Predicated region
    $region50: #{tpu_custom_call.1} parent=1 // pred_check
      _
    $region51: #{tpu_custom_call.1} parent=1 // pred_check_branch
      %358 = sbr.rel (0) target = $region53
    $region52: #{tpu_custom_call.1} parent=1 // pred_region
      %359 = dma.done [#allocation4], 128
    $region53: #{tpu_custom_call.1} parent=1 // pred_fallthru
      _
    %360 = vsyncpa [#allocation3], 1
    %361 = vsyncpa [#allocation6], 1
    %362 = vsyncpa [#allocation9], 1
    %363 = vsyncpa [#allocation4], 1

</llo_original>
